<compile_context>
chip_gen: v6e
topology: v6e:2x2x1
jax: 0.10.0
libtpu: 0.0.40
codegen_flags: <defaults>
</compile_context>

<pallas_src>
import functools

import jax
import jax.numpy as jnp
from jax.experimental import pallas as pl
from jax.experimental.pallas import tpu as pltpu

_NEG_INF = -1e30


def _round_up(v, m):
    return (v + m - 1) // m * m


def _pad2(a, rows, cols):
    return jnp.pad(a, ((0, rows - a.shape[0]), (0, cols - a.shape[1])))


def _vmem_limit_bytes():
    """Scoped-VMEM limit: ~85% of physical (defaults are only 16/32 MiB)."""
    cap = 64 * 1024 * 1024
    try:
        cap = int(pltpu.get_tpu_info().vmem_capacity_bytes)
    except Exception:
        pass
    return min(int(0.85 * cap), 112 * 1024 * 1024)


def _pick_tm(n_pad, f_out, vmem_limit):
    """Largest destination-row tile whose attention working set fits VMEM."""
    budget = int(0.6 * vmem_limit)
    for tm in (512, 256, 128):
        if n_pad % tm:
            continue
        blocks = 2 * (tm * n_pad * 2           # adj-bias tile (bf16), 2 bufs
                      + n_pad * f_out * 2      # xw source block (bf16)
                      + 2 * tm * f_out * 2     # xw dst tile + out tile (bf16)
                      + (n_pad + 2 * tm) * 4)  # alpha row/col + lse (f32)
        temps = 3 * tm * n_pad * 4             # e / p / attn f32 temporaries
        if blocks + temps <= budget:
            return tm
    return 128


# --------------------------------------------------------------------------
# Kernel 1: xw = x @ W  (all heads in one matmul)  +  folded attention
#           columns  al = x @ [W_h @ a_src_h | W_h @ a_dst_h | 0...]
# --------------------------------------------------------------------------
def _linear_fold_kernel(x_ref, w_ref, wa_ref, xw_ref, al_ref):
    x = x_ref[...]
    xw_ref[...] = jnp.dot(
        x, w_ref[...], preferred_element_type=jnp.float32).astype(xw_ref.dtype)
    al_ref[...] = jnp.dot(x, wa_ref[...], preferred_element_type=jnp.float32)


def linear_fold(x_bf16, w_bf16, wa_bf16, *, tm, vmem_limit):
    n_pad, f_in = x_bf16.shape
    hcat = w_bf16.shape[1]
    a_pad = wa_bf16.shape[1]
    return pl.pallas_call(
        _linear_fold_kernel,
        out_shape=(jax.ShapeDtypeStruct((n_pad, hcat), jnp.bfloat16),
                   jax.ShapeDtypeStruct((n_pad, a_pad), jnp.float32)),
        grid=(n_pad // tm,),
        in_specs=[
            pl.BlockSpec((tm, f_in), lambda i: (i, 0)),
            pl.BlockSpec((f_in, hcat), lambda i: (0, 0)),
            pl.BlockSpec((f_in, a_pad), lambda i: (0, 0)),
        ],
        out_specs=(pl.BlockSpec((tm, hcat), lambda i: (i, 0)),
                   pl.BlockSpec((tm, a_pad), lambda i: (i, 0))),
        compiler_params=pltpu.CompilerParams(
            dimension_semantics=("parallel",),
            vmem_limit_bytes=vmem_limit),
    )(x_bf16, w_bf16, wa_bf16)


# --------------------------------------------------------------------------
# Kernel 2: layer-1 attention + aggregation, grid = (row_tiles, heads).
# Emits the aggregated bf16 features and a per-row lse (no dense attn).
# --------------------------------------------------------------------------
def _attn_agg_kernel(xw_dst_ref, xw_src_ref, asrc_ref, adst_ref, adjb_ref,
                     bias_ref, out_ref, lse_ref):
    del xw_dst_ref  # dst features are not needed (logits are precomputed)
    s = adst_ref[...] + asrc_ref[...]                 # (tm, n_pad) f32
    s = jnp.maximum(s, 0.2 * s)                       # LeakyReLU(0.2)
    e = s + adjb_ref[...].astype(jnp.float32)         # additive edge mask
    m = jnp.max(e, axis=1, keepdims=True)
    p = jnp.exp(e - m)
    denom = jnp.sum(p, axis=1, keepdims=True)
    lse_ref[...] = m + jnp.log(denom)
    attn = (p * pl.reciprocal(denom, approx=True)).astype(jnp.bfloat16)
    out = jnp.dot(attn, xw_src_ref[...], preferred_element_type=jnp.float32)
    out_ref[...] = (out + bias_ref[...]).astype(out_ref.dtype)


def gat_attention_layer1(xw, asrc, adst, adj_bias, bias, *, heads, f_out, tm,
                         vmem_limit):
    n_pad = adj_bias.shape[0]
    hcat = heads * f_out
    grid = (n_pad // tm, heads)   # heads innermost: adj tile fetched once/row
    return pl.pallas_call(
        _attn_agg_kernel,
        out_shape=(jax.ShapeDtypeStruct((n_pad, hcat), jnp.bfloat16),
                   jax.ShapeDtypeStruct((heads, n_pad, 1), jnp.float32)),
        grid=grid,
        in_specs=[
            pl.BlockSpec((tm, f_out), lambda i, h: (i, h)),      # xw dst tile
            pl.BlockSpec((n_pad, f_out), lambda i, h: (0, h)),   # xw sources
            pl.BlockSpec((None, 1, n_pad), lambda i, h: (h, 0, 0)),
            pl.BlockSpec((None, tm, 1), lambda i, h: (h, i, 0)),
            pl.BlockSpec((tm, n_pad), lambda i, h: (i, 0)),      # adj bias
            pl.BlockSpec((1, f_out), lambda i, h: (0, h)),       # bias slice
        ],
        out_specs=(
            pl.BlockSpec((tm, f_out), lambda i, h: (i, h)),
            pl.BlockSpec((None, tm, 1), lambda i, h: (h, i, 0)),
        ),
        compiler_params=pltpu.CompilerParams(
            dimension_semantics=("parallel", "parallel"),
            vmem_limit_bytes=vmem_limit),
    )(xw, xw, asrc, adst, adj_bias, bias)


# --------------------------------------------------------------------------
# Kernel 3: LayerNorm1 + ELU fused into layer 2's linear (+ folded attention
# columns for layer 2).
# --------------------------------------------------------------------------
def _ln_elu_linear_kernel(h_ref, g_ref, b_ref, w_ref, wa_ref, xw_ref, al_ref):
    h = h_ref[...].astype(jnp.float32)
    d = h.shape[1]
    mu = jnp.sum(h, axis=1, keepdims=True) * (1.0 / d)
    xc = h - mu
    var = jnp.sum(xc * xc, axis=1, keepdims=True) * (1.0 / d)
    y = xc * jax.lax.rsqrt(var + 1e-5) * g_ref[...] + b_ref[...]
    act = jnp.where(y > 0.0, y, jnp.exp(jnp.minimum(y, 0.0)) - 1.0)  # ELU
    act_b = act.astype(jnp.bfloat16)
    xw_ref[...] = jnp.dot(
        act_b, w_ref[...], preferred_element_type=jnp.float32).astype(xw_ref.dtype)
    al_ref[...] = jnp.dot(act_b, wa_ref[...],
                          preferred_element_type=jnp.float32)


def ln_elu_linear(h1, gamma, beta, w_bf16, wa_bf16, *, tm, vmem_limit):
    n_pad, d = h1.shape
    c_pad = w_bf16.shape[1]
    a_pad = wa_bf16.shape[1]
    return pl.pallas_call(
        _ln_elu_linear_kernel,
        out_shape=(jax.ShapeDtypeStruct((n_pad, c_pad), jnp.bfloat16),
                   jax.ShapeDtypeStruct((n_pad, a_pad), jnp.float32)),
        grid=(n_pad // tm,),
        in_specs=[
            pl.BlockSpec((tm, d), lambda i: (i, 0)),
            pl.BlockSpec((1, d), lambda i: (0, 0)),
            pl.BlockSpec((1, d), lambda i: (0, 0)),
            pl.BlockSpec((d, c_pad), lambda i: (0, 0)),
            pl.BlockSpec((d, a_pad), lambda i: (0, 0)),
        ],
        out_specs=(pl.BlockSpec((tm, c_pad), lambda i: (i, 0)),
                   pl.BlockSpec((tm, a_pad), lambda i: (i, 0))),
        compiler_params=pltpu.CompilerParams(
            dimension_semantics=("parallel",),
            vmem_limit_bytes=vmem_limit),
    )(h1, gamma, beta, w_bf16, wa_bf16)


# --------------------------------------------------------------------------
# Kernel 4: layer-2 attention + LayerNorm2 + residual Linear + log_softmax.
# Emits log-probs and the per-row lse (no dense attn writeback).
# --------------------------------------------------------------------------
def _attn_final_kernel(xw_dst_ref, xw_src_ref, asrc_ref, adst_ref, adjb_ref,
                       bias_ref, g_ref, b_ref, xid_ref, wres_ref, bres_ref,
                       logp_ref, lse_ref, *, num_classes):
    del xw_dst_ref
    s = adst_ref[...] + asrc_ref[...]
    s = jnp.maximum(s, 0.2 * s)
    e = s + adjb_ref[...].astype(jnp.float32)
    m = jnp.max(e, axis=1, keepdims=True)
    p = jnp.exp(e - m)
    denom = jnp.sum(p, axis=1, keepdims=True)
    lse_ref[...] = m + jnp.log(denom)
    attn = (p * pl.reciprocal(denom, approx=True)).astype(jnp.bfloat16)

    # heads=1, concat=False -> mean over heads is the head itself; add bias
    z = jnp.dot(attn, xw_src_ref[...],
                preferred_element_type=jnp.float32) + bias_ref[...]

    # LayerNorm over the (padded) class dim, masked to the real classes
    c_pad = z.shape[1]
    cmask = (jax.lax.broadcasted_iota(jnp.int32, (1, c_pad), 1)
             < num_classes).astype(jnp.float32)
    inv_c = 1.0 / float(num_classes)
    mu = jnp.sum(z * cmask, axis=1, keepdims=True) * inv_c
    xc = (z - mu) * cmask
    var = jnp.sum(xc * xc, axis=1, keepdims=True) * inv_c
    y = xc * jax.lax.rsqrt(var + 1e-5) * g_ref[...] + b_ref[...]

    # residual Linear(identity) + log_softmax over real classes
    res = jnp.dot(xid_ref[...], wres_ref[...],
                  preferred_element_type=jnp.float32) + bres_ref[...]
    zz = y + res
    zm = jnp.where(cmask > 0.0, zz, _NEG_INF)
    mz = jnp.max(zm, axis=1, keepdims=True)
    sh = zm - mz
    lse_c = jnp.log(jnp.sum(jnp.exp(sh) * cmask, axis=1, keepdims=True))
    logp_ref[...] = sh - lse_c


def gat_attention_final(xw2, asrc, adst, adj_bias, bias, gamma, beta,
                        x_id, w_res, b_res, *, num_classes, tm, vmem_limit):
    n_pad, c_pad = xw2.shape
    f_in = x_id.shape[1]
    kern = functools.partial(_attn_final_kernel, num_classes=num_classes)
    return pl.pallas_call(
        kern,
        out_shape=(jax.ShapeDtypeStruct((n_pad, c_pad), jnp.float32),
                   jax.ShapeDtypeStruct((n_pad, 1), jnp.float32)),
        grid=(n_pad // tm,),
        in_specs=[
            pl.BlockSpec((tm, c_pad), lambda i: (i, 0)),       # xw dst tile
            pl.BlockSpec((n_pad, c_pad), lambda i: (0, 0)),    # xw sources
            pl.BlockSpec((1, n_pad), lambda i: (0, 0)),        # alpha_src row
            pl.BlockSpec((tm, 1), lambda i: (i, 0)),           # alpha_dst col
            pl.BlockSpec((tm, n_pad), lambda i: (i, 0)),       # adj bias
            pl.BlockSpec((1, c_pad), lambda i: (0, 0)),        # bias2
            pl.BlockSpec((1, c_pad), lambda i: (0, 0)),        # gamma2
            pl.BlockSpec((1, c_pad), lambda i: (0, 0)),        # beta2
            pl.BlockSpec((tm, f_in), lambda i: (i, 0)),        # identity x
            pl.BlockSpec((f_in, c_pad), lambda i: (0, 0)),     # w_res
            pl.BlockSpec((1, c_pad), lambda i: (0, 0)),        # b_res
        ],
        out_specs=(pl.BlockSpec((tm, c_pad), lambda i: (i, 0)),
                   pl.BlockSpec((tm, 1), lambda i: (i, 0))),
        compiler_params=pltpu.CompilerParams(
            dimension_semantics=("parallel",),
            vmem_limit_bytes=vmem_limit),
    )(xw2, xw2, asrc, adst, adj_bias, bias, gamma, beta, x_id, w_res, b_res)


# --------------------------------------------------------------------------
# Full GATModel forward (eval mode)
# --------------------------------------------------------------------------
def gat_model_forward(x, adj, src_sl, dst_sl, p):
    n, f_in = x.shape
    heads1, hidden = p["att_src1"].shape
    hcat = heads1 * hidden
    num_classes = p["w2"].shape[1]

    n_pad = _round_up(max(n, 8), 128)
    c_pad = _round_up(max(num_classes, 1), 128)
    a_pad = max(128, _round_up(2 * heads1, 128))
    vmem_limit = _vmem_limit_bytes()
    tm = _pick_tm(n_pad, max(hidden, c_pad), vmem_limit)

    x_p = _pad2(x, n_pad, f_in).astype(jnp.bfloat16)

    # adjacency as additive bf16 bias (0 on edges, -1e30 off-edge / padding)
    adj_p = _pad2(adj, n_pad, n_pad)
    adj_bias = jnp.where(adj_p > 0.0, 0.0, _NEG_INF).astype(jnp.bfloat16)

    # ---- layer-1 weights with folded attention-vector columns ----
    w1 = p["w1"].astype(jnp.bfloat16)                        # [Fin, H*F]
    w1_3d = p["w1"].reshape(f_in, heads1, hidden)
    wa1 = jnp.zeros((f_in, a_pad), jnp.float32)
    wa1 = wa1.at[:, :heads1].set(
        jnp.einsum("fhd,hd->fh", w1_3d, p["att_src1"]))
    wa1 = wa1.at[:, heads1:2 * heads1].set(
        jnp.einsum("fhd,hd->fh", w1_3d, p["att_dst1"]))
    wa1 = wa1.astype(jnp.bfloat16)

    # ---- layer-2 weights (class dim zero-padded, folded attention cols) ----
    w2 = _pad2(p["w2"], hcat, c_pad).astype(jnp.bfloat16)
    wa2 = jnp.zeros((hcat, 128), jnp.float32)
    wa2 = wa2.at[:, 0:1].set(p["w2"] @ p["att_src2"].T)
    wa2 = wa2.at[:, 1:2].set(p["w2"] @ p["att_dst2"].T)
    wa2 = wa2.astype(jnp.bfloat16)

    bias2 = _pad2(p["bias2"], 1, c_pad)
    gamma2 = _pad2(p["gamma2"], 1, c_pad)
    beta2 = _pad2(p["beta2"], 1, c_pad)
    w_res = _pad2(p["w_res"], f_in, c_pad).astype(jnp.bfloat16)
    b_res = _pad2(p["b_res"], 1, c_pad)

    # ---- layer 1: GATConv(Fin, 128, heads=8, concat=True) ----
    xw1, al1 = linear_fold(x_p, w1, wa1, tm=tm, vmem_limit=vmem_limit)
    asrc1 = al1[:, :heads1].T.reshape(heads1, 1, n_pad)
    adst1 = al1[:, heads1:2 * heads1].T.reshape(heads1, n_pad, 1)
    h1, lse1 = gat_attention_layer1(
        xw1, asrc1, adst1, adj_bias, p["bias1"],
        heads=heads1, f_out=hidden, tm=tm, vmem_limit=vmem_limit)

    # ---- layer 2: LN1+ELU fused into linear, GATConv(1024, C, heads=1),
    #      LN2 + residual + log_softmax fused epilogue ----
    xw2, al2 = ln_elu_linear(h1, p["gamma1"], p["beta1"], w2, wa2,
                             tm=tm, vmem_limit=vmem_limit)
    asrc2 = al2[:, 0:1].T                       # (1, n_pad)
    adst2 = al2[:, 1:2]                         # (n_pad, 1)
    logp_pad, lse2 = gat_attention_final(
        xw2, asrc2, adst2, adj_bias, bias2, gamma2, beta2,
        x_p, w_res, b_res, num_classes=num_classes, tm=tm,
        vmem_limit=vmem_limit)

    log_probs = logp_pad[:n, :num_classes]

    # ---- per-edge attention coefficients, exact f32, O(E) gathers only ----
    e1 = al1[src_sl, :heads1] + al1[dst_sl, heads1:2 * heads1]     # (E, H)
    e1 = jnp.maximum(e1, 0.2 * e1)
    alpha1 = jnp.exp(e1 - lse1[:, :, 0].T[dst_sl])                 # (E, H)

    e2 = al2[src_sl, 0] + al2[dst_sl, 1]                           # (E,)
    e2 = jnp.maximum(e2, 0.2 * e2)
    alpha2 = jnp.exp(e2 - lse2[dst_sl, 0])[:, None]                # (E, 1)

    return log_probs, alpha1, alpha2


if __name__ == "__main__":
    key = jax.random.PRNGKey(0)
    N = 16               # number of graph nodes
    in_channels = 32
    num_classes = 8
    hidden = 128
    heads1 = 8

    keys = jax.random.split(key, 16)
    x = jax.random.normal(keys[0], (N, in_channels), jnp.float32)

    # graph: bidirectional ring; PyG-style self-loops appended at the end
    idx = jnp.arange(N, dtype=jnp.int32)
    src = jnp.concatenate([idx, (idx + 1) % N])
    dst = jnp.concatenate([(idx + 1) % N, idx])
    src_sl = jnp.concatenate([src, idx])
    dst_sl = jnp.concatenate([dst, idx])
    adj = jnp.zeros((N, N), jnp.float32).at[dst_sl, src_sl].set(1.0)

    params = dict(
        w1=0.1 * jax.random.normal(keys[1], (in_channels, heads1 * hidden), jnp.float32),
        att_src1=0.1 * jax.random.normal(keys[2], (heads1, hidden), jnp.float32),
        att_dst1=0.1 * jax.random.normal(keys[3], (heads1, hidden), jnp.float32),
        bias1=0.01 * jax.random.normal(keys[4], (1, heads1 * hidden), jnp.float32),
        gamma1=jnp.ones((1, heads1 * hidden), jnp.float32),
        beta1=jnp.zeros((1, heads1 * hidden), jnp.float32),
        w2=0.1 * jax.random.normal(keys[5], (heads1 * hidden, num_classes), jnp.float32),
        att_src2=0.1 * jax.random.normal(keys[6], (1, num_classes), jnp.float32),
        att_dst2=0.1 * jax.random.normal(keys[7], (1, num_classes), jnp.float32),
        bias2=0.01 * jax.random.normal(keys[8], (1, num_classes), jnp.float32),
        gamma2=jnp.ones((1, num_classes), jnp.float32),
        beta2=jnp.zeros((1, num_classes), jnp.float32),
        w_res=0.1 * jax.random.normal(keys[9], (in_channels, num_classes), jnp.float32),
        b_res=0.01 * jax.random.normal(keys[10], (1, num_classes), jnp.float32),
    )

    log_probs, alpha1, alpha2 = gat_model_forward(x, adj, src_sl, dst_sl, params)
    jax.block_until_ready((log_probs, alpha1, alpha2))

    assert log_probs.shape == (N, num_classes)
    assert alpha1.shape == (int(src_sl.shape[0]), heads1)
    assert alpha2.shape == (int(src_sl.shape[0]), 1)
    # rows of log_softmax must exponentiate-sum to 1
    assert jnp.allclose(jnp.exp(log_probs).sum(axis=1), 1.0, atol=1e-3)
    # attention rows sum to ~1 over incoming edges of each node (f32-exact
    # per-edge alphas reconstructed from logits + in-kernel lse)
    assert jnp.allclose(
        jnp.zeros((N,)).at[dst_sl].add(alpha1[:, 0]), 1.0, atol=1e-3)
    assert jnp.allclose(
        jnp.zeros((N,)).at[dst_sl].add(alpha2[:, 0]), 1.0, atol=1e-3)

    print("KERNEL_OK")
</pallas_src>

<mosaic_0001>
module attributes {stable_mosaic.version = 11 : i64} {
  func.func @_linear_fold_kernel(%arg0: i32, %arg1: memref<128x32xbf16, #tpu.memory_space<vmem>>, %arg2: memref<32x1024xbf16, #tpu.memory_space<vmem>>, %arg3: memref<32x128xbf16, #tpu.memory_space<vmem>>, %arg4: memref<128x1024xbf16, #tpu.memory_space<vmem>>, %arg5: memref<128x128xf32, #tpu.memory_space<vmem>>) attributes {dimension_semantics = [#tpu.dimension_semantics<parallel>], iteration_bounds = array<i64: 1>, scalar_prefetch = 0 : i64, scratch_operands = 0 : i64, tpu.core_type = #tpu.core_type<tc>, window_params = [{transform_indices = @transform_0, window_bounds = array<i64: 128, 32>}, {pipeline_mode = #tpu.pipeline_mode<synchronous>, transform_indices = @transform_1, window_bounds = array<i64: 32, 1024>}, {pipeline_mode = #tpu.pipeline_mode<synchronous>, transform_indices = @transform_2, window_bounds = array<i64: 32, 128>}, {transform_indices = @transform_3, window_bounds = array<i64: 128, 1024>}, {transform_indices = @transform_4, window_bounds = array<i64: 128, 128>}]} {
    %c0 = arith.constant 0 : index
    %c0_0 = arith.constant 0 : index
    %0 = vector.load %arg1[%c0, %c0_0] : memref<128x32xbf16, #tpu.memory_space<vmem>>, vector<128x32xbf16>
    %c0_1 = arith.constant 0 : index
    %c0_2 = arith.constant 0 : index
    %1 = vector.load %arg2[%c0_1, %c0_2] : memref<32x1024xbf16, #tpu.memory_space<vmem>>, vector<32x1024xbf16>
    %cst = arith.constant dense<0.000000e+00> : vector<128x1024xf32>
    %2 = tpu.matmul %0, %1, %cst {dimension_numbers = #tpu.dot_dimension_numbers<[1], [0], [0], [1], [0, 0, 1, 1], [], []>} : vector<128x32xbf16>, vector<32x1024xbf16>, vector<128x1024xf32> -> vector<128x1024xf32>
    %3 = arith.truncf %2 : vector<128x1024xf32> to vector<128x1024xbf16>
    %c0_3 = arith.constant 0 : index
    %c0_4 = arith.constant 0 : index
    %4 = vector.load %arg4[%c0_3, %c0_4] : memref<128x1024xbf16, #tpu.memory_space<vmem>>, vector<128x1024xbf16>
    tpu.vector_store %arg4[%c0_3, %c0_4], %3 {strides = array<i32>} : memref<128x1024xbf16, #tpu.memory_space<vmem>>, vector<128x1024xbf16>,
    %c0_5 = arith.constant 0 : index
    %c0_6 = arith.constant 0 : index
    %5 = vector.load %arg3[%c0_5, %c0_6] : memref<32x128xbf16, #tpu.memory_space<vmem>>, vector<32x128xbf16>
    %cst_7 = arith.constant dense<0.000000e+00> : vector<128x128xf32>
    %6 = tpu.matmul %0, %5, %cst_7 {dimension_numbers = #tpu.dot_dimension_numbers<[1], [0], [0], [1], [0, 0, 1, 1], [], []>} : vector<128x32xbf16>, vector<32x128xbf16>, vector<128x128xf32> -> vector<128x128xf32>
    %c0_8 = arith.constant 0 : index
    %c0_9 = arith.constant 0 : index
    %7 = vector.load %arg5[%c0_8, %c0_9] : memref<128x128xf32, #tpu.memory_space<vmem>>, vector<128x128xf32>
    tpu.vector_store %arg5[%c0_8, %c0_9], %6 {strides = array<i32>} : memref<128x128xf32, #tpu.memory_space<vmem>>, vector<128x128xf32>,
    return
  }
  func.func @transform_0(%arg0: i32) -> (i32, i32) {
    %c0_i32 = arith.constant 0 : i32
    %c0_i32_0 = arith.constant 0 : i32
    return %arg0, %c0_i32 : i32, i32
  }
  func.func @transform_1(%arg0: i32) -> (i32, i32) {
    %c0_i32 = arith.constant 0 : i32
    %c0_i32_0 = arith.constant 0 : i32
    %c0_i32_1 = arith.constant 0 : i32
    return %c0_i32, %c0_i32_0 : i32, i32
  }
  func.func @transform_2(%arg0: i32) -> (i32, i32) {
    %c0_i32 = arith.constant 0 : i32
    %c0_i32_0 = arith.constant 0 : i32
    %c0_i32_1 = arith.constant 0 : i32
    return %c0_i32, %c0_i32_0 : i32, i32
  }
  func.func @transform_3(%arg0: i32) -> (i32, i32) {
    %c0_i32 = arith.constant 0 : i32
    %c0_i32_0 = arith.constant 0 : i32
    return %arg0, %c0_i32 : i32, i32
  }
  func.func @transform_4(%arg0: i32) -> (i32, i32) {
    %c0_i32 = arith.constant 0 : i32
    %c0_i32_0 = arith.constant 0 : i32
    return %arg0, %c0_i32 : i32, i32
  }
}

</mosaic_0001>

<llo_original>
// kernel: tpu_custom_call.1
$region0: #{tpu_custom_call.1}
  #allocation0 [shape = 'u32[]', space=smem, size = 0x4, offset = 0x4, fixed_abs, tag = 'smem constant byte address 0x4 - core index']
  #allocation1 [shape = 'u32[144,128]{1,0:T(1,128)}', space=vmem, size = 0x12000, scoped, tag = 'internal scratch']
  %s0 = inlined_call_operand.vmem [shape: bf16[128,32], index: 0, kind: input, shape index: {}]
  %s1 = inlined_call_operand.hbm [shape: bf16[32,1024], index: 1, kind: input, shape index: {}]
  %s2 = inlined_call_operand.vmem [shape: bf16[32,128], index: 2, kind: input, shape index: {}]
  %s3 = inlined_call_operand.hbm [shape: bf16[128,1024], index: 3, kind: output, shape index: {0}]
  %s4 = inlined_call_operand.hbm [shape: f32[128,128], index: 4, kind: output, shape index: {1}]
  %5 = xla_tuple %s3, %s4
  %s6 = sld [smem:[#allocation0]]
  $region34: #{tpu_custom_call.1} parent=0
    _
  %s8 = ssub.s32 1, %s6
  %s9 = scalar_select 0, %s8, %s6
  $region1: #{tpu_custom_call.1} parent=0
    #allocation2 [shape = 'u8[65536]{0}', space=vmem, size = 0x10000, scoped, tag = 'input window, operand 1, single buffered']
    #allocation3 [shape = 's32[1]{0}', space=sflag, size = 0x4, scoped, tag = 'scoped memory for tpu_custom_call.1']
    #allocation4 [shape = 's32[1]{0}', space=sflag, size = 0x4, scoped, tag = 'scoped memory for tpu_custom_call.1']
    #allocation5 [shape = 'u8[262144]{0}', space=vmem, size = 0x40000, scoped, tag = 'output window, operand 0, single buffered']
    #allocation6 [shape = 'u8[65536]{0}', space=vmem, size = 0x10000, scoped, tag = 'output window, operand 1, single buffered']
    #allocation7 [shape = 's32[1]{0}', space=sflag, size = 0x4, scoped, tag = 'scoped memory for tpu_custom_call.1']
    %10 = vsyncpa [#allocation3], 0
    %11 = vsyncpa [#allocation4], 0
    %12 = vsyncpa [#allocation7], 0
    // Predicated region
    $region2: #{tpu_custom_call.1} parent=1 // pred_check
      _
    $region3: #{tpu_custom_call.1} parent=1 // pred_check_branch
      %14 = sbr.rel (0) target = $region5
    $region4: #{tpu_custom_call.1} parent=1 // pred_region
      _
    $region5: #{tpu_custom_call.1} parent=1 // pred_fallthru
      _
    // Predicated region
    $region6: #{tpu_custom_call.1} parent=1 // pred_check
      _
    $region7: #{tpu_custom_call.1} parent=1 // pred_check_branch
      %16 = sbr.rel (0) target = $region9
    $region8: #{tpu_custom_call.1} parent=1 // pred_region
      %s18 = ssub.s32 2048, 2048
      %19 = vsyncadd [#allocation3], %s18
      %s20 = sshll.u32 [#allocation2], 4
      %s21 = int_to_ptr.vmem [resolvable:$true] %s20
      %26 = dma.hbm_to_vmem [thread:$0]  %s1, 2048, %s21, [#allocation3], 512, 512, 32
    $region9: #{tpu_custom_call.1} parent=1 // pred_fallthru
      _
    // Predicated region
    $region10: #{tpu_custom_call.1} parent=1 // pred_check
      _
    $region11: #{tpu_custom_call.1} parent=1 // pred_check_branch
      %28 = sbr.rel (0) target = $region13
    $region12: #{tpu_custom_call.1} parent=1 // pred_region
      _
    $region13: #{tpu_custom_call.1} parent=1 // pred_fallthru
      _
    // Predicated region
    $region14: #{tpu_custom_call.1} parent=1 // pred_check
      _
    $region15: #{tpu_custom_call.1} parent=1 // pred_check_branch
      %30 = sbr.rel (0) target = $region17
    $region16: #{tpu_custom_call.1} parent=1 // pred_region
      %31 = dma.done [#allocation3], 2048
    $region17: #{tpu_custom_call.1} parent=1 // pred_fallthru
      _
    %v33 = vld [vmem:[%s0] sm:$0xf]
    %v34 = vld [vmem:[%s0 + $0x4] sm:$0xf]
    %v35 = vld [vmem:[%s0 + $0x8] sm:$0xf]
    %v36 = vld [vmem:[%s0 + $0xc] sm:$0xf]
    %v37 = vld [vmem:[%s0 + $0x10] sm:$0xf]
    %v38 = vld [vmem:[%s0 + $0x14] sm:$0xf]
    %v39 = vld [vmem:[%s0 + $0x18] sm:$0xf]
    %v40 = vld [vmem:[%s0 + $0x1c] sm:$0xf]
    %v41 = vld [vmem:[%s0 + $0x20] sm:$0xf]
    %v42 = vld [vmem:[%s0 + $0x24] sm:$0xf]
    %v43 = vld [vmem:[%s0 + $0x28] sm:$0xf]
    %v44 = vld [vmem:[%s0 + $0x2c] sm:$0xf]
    %v45 = vld [vmem:[%s0 + $0x30] sm:$0xf]
    %v46 = vld [vmem:[%s0 + $0x34] sm:$0xf]
    %v47 = vld [vmem:[%s0 + $0x38] sm:$0xf]
    %v48 = vld [vmem:[%s0 + $0x3c] sm:$0xf]
    %v49 = vld [vmem:[#allocation2] sm:$0xff]
    %v50 = vld [vmem:[#allocation2 + $0x8] sm:$0xff]
    %v51 = vld [vmem:[#allocation2 + $0x10] sm:$0xff]
    %v52 = vld [vmem:[#allocation2 + $0x18] sm:$0xff]
    %v53 = vld [vmem:[#allocation2 + $0x20] sm:$0xff]
    %v54 = vld [vmem:[#allocation2 + $0x28] sm:$0xff]
    %v55 = vld [vmem:[#allocation2 + $0x30] sm:$0xff]
    %v56 = vld [vmem:[#allocation2 + $0x38] sm:$0xff]
    %v57 = vld [vmem:[#allocation2 + $0x40] sm:$0xff]
    %v58 = vld [vmem:[#allocation2 + $0x48] sm:$0xff]
    %v59 = vld [vmem:[#allocation2 + $0x50] sm:$0xff]
    %v60 = vld [vmem:[#allocation2 + $0x58] sm:$0xff]
    %v61 = vld [vmem:[#allocation2 + $0x60] sm:$0xff]
    %v62 = vld [vmem:[#allocation2 + $0x68] sm:$0xff]
    %v63 = vld [vmem:[#allocation2 + $0x70] sm:$0xff]
    %v64 = vld [vmem:[#allocation2 + $0x78] sm:$0xff]
    %v81 = vunpack.c.l.b16 %v33
    %v82 = vunpack.c.l.b16 %v34
    %v83 = vunpack.c.l.b16 %v35
    %v84 = vunpack.c.l.b16 %v36
    %v85 = vunpack.c.l.b16 %v37
    %v86 = vunpack.c.l.b16 %v38
    %v87 = vunpack.c.l.b16 %v39
    %v88 = vunpack.c.l.b16 %v40
    %v89 = vunpack.c.l.b16 %v41
    %v90 = vunpack.c.l.b16 %v42
    %v91 = vunpack.c.l.b16 %v43
    %v92 = vunpack.c.l.b16 %v44
    %v93 = vunpack.c.l.b16 %v45
    %v94 = vunpack.c.l.b16 %v46
    %v95 = vunpack.c.l.b16 %v47
    %v96 = vunpack.c.l.b16 %v48
    %v97 = vpack.c.b16 %v82, %v81
    %v98 = vpack.c.b16 %v84, %v83
    %v99 = vpack.c.b16 %v86, %v85
    %v100 = vpack.c.b16 %v88, %v87
    %v101 = vpack.c.b16 %v90, %v89
    %v102 = vpack.c.b16 %v92, %v91
    %v103 = vpack.c.b16 %v94, %v93
    %v104 = vpack.c.b16 %v96, %v95
    %v121 = vunpack.c.l.b16 %v49
    %v122 = vunpack.c.h.b16 %v49
    %v123 = vunpack.c.l.b16 %v50
    %v124 = vunpack.c.h.b16 %v50
    %v125 = vunpack.c.l.b16 %v51
    %v126 = vunpack.c.h.b16 %v51
    %v127 = vunpack.c.l.b16 %v52
    %v128 = vunpack.c.h.b16 %v52
    %v129 = vunpack.c.l.b16 %v53
    %v130 = vunpack.c.h.b16 %v53
    %v131 = vunpack.c.l.b16 %v54
    %v132 = vunpack.c.h.b16 %v54
    %v133 = vunpack.c.l.b16 %v55
    %v134 = vunpack.c.h.b16 %v55
    %v135 = vunpack.c.l.b16 %v56
    %v136 = vunpack.c.h.b16 %v56
    %v137 = vunpack.c.l.b16 %v57
    %v138 = vunpack.c.h.b16 %v57
    %v139 = vunpack.c.l.b16 %v58
    %v140 = vunpack.c.h.b16 %v58
    %v141 = vunpack.c.l.b16 %v59
    %v142 = vunpack.c.h.b16 %v59
    %v143 = vunpack.c.l.b16 %v60
    %v144 = vunpack.c.h.b16 %v60
    %v145 = vunpack.c.l.b16 %v61
    %v146 = vunpack.c.h.b16 %v61
    %v147 = vunpack.c.l.b16 %v62
    %v148 = vunpack.c.h.b16 %v62
    %v149 = vunpack.c.l.b16 %v63
    %v150 = vunpack.c.h.b16 %v63
    %v151 = vunpack.c.l.b16 %v64
    %v152 = vunpack.c.h.b16 %v64
    %v153 = vpack.c.b16 %v129, %v121
    %v154 = vpack.c.b16 %v130, %v122
    %v155 = vpack.c.b16 %v131, %v123
    %v156 = vpack.c.b16 %v132, %v124
    %v157 = vpack.c.b16 %v133, %v125
    %v158 = vpack.c.b16 %v134, %v126
    %v159 = vpack.c.b16 %v135, %v127
    %v160 = vpack.c.b16 %v136, %v128
    %v161 = vpack.c.b16 %v145, %v137
    %v162 = vpack.c.b16 %v146, %v138
    %v163 = vpack.c.b16 %v147, %v139
    %v164 = vpack.c.b16 %v148, %v140
    %v165 = vpack.c.b16 %v149, %v141
    %v166 = vpack.c.b16 %v150, %v142
    %v167 = vpack.c.b16 %v151, %v143
    %v168 = vpack.c.b16 %v152, %v144
    %vm185 = vcmask 261120
    %v187 = vsel %vm185, %v97, 0
    %v190 = vsel %vm185, %v98, 0
    %v193 = vsel %vm185, %v99, 0
    %v196 = vsel %vm185, %v100, 0
    %v199 = vsel %vm185, %v101, 0
    %v202 = vsel %vm185, %v102, 0
    %v205 = vsel %vm185, %v103, 0
    %v208 = vsel %vm185, %v104, 0
    %210 = vmatprep.subr.bf16.mxu0 0
    %211 = vmatpush1.bf16.msra.mxu0 0
    %212 = vmatprep.subr.bf16.mxu0 0
    %213 = vmatpush1.bf16.msra.mxu0 0
    %214 = vmatprep.subr.bf16.mxu0 0
    %215 = vmatpush1.bf16.msra.mxu0 0
    %216 = vmatprep.subr.bf16.mxu0 0
    %217 = vmatpush1.bf16.msra.mxu0 0
    %218 = vmatprep.subr.bf16.mxu0 0
    %219 = vmatpush1.bf16.msra.mxu0 0
    %220 = vmatprep.subr.bf16.mxu0 0
    %221 = vmatpush1.bf16.msra.mxu0 0
    %222 = vmatprep.subr.bf16.mxu0 %v162
    %223 = vmatpush1.bf16.msra.mxu0 %v161
    %224 = vmatprep.subr.bf16.mxu0 %v154
    %225 = vmatpush1.bf16.msra.mxu0 %v153
    %226 = vmatprep.subr.bf16.mxu0 0
    %227 = vmatpush2.bf16.msra.mxu0 0
    %228 = vmatprep.subr.bf16.mxu0 0
    %229 = vmatpush2.bf16.msra.mxu0 0
    %230 = vmatprep.subr.bf16.mxu0 0
    %231 = vmatpush2.bf16.msra.mxu0 0
    %232 = vmatprep.subr.bf16.mxu0 0
    %233 = vmatpush2.bf16.msra.mxu0 0
    %234 = vmatprep.subr.bf16.mxu0 0
    %235 = vmatpush2.bf16.msra.mxu0 0
    %236 = vmatprep.subr.bf16.mxu0 0
    %237 = vmatpush2.bf16.msra.mxu0 0
    %238 = vmatprep.subr.bf16.mxu0 0
    %239 = vmatpush2.bf16.msra.mxu0 0
    %240 = vmatprep.subr.bf16.mxu0 0
    %241 = vmatpush2.bf16.msra.mxu0 0
    %242 = vmatprep.mubr.bf16.mxu0 0
    %243 = vmatmul.mubr.bf16.gmra.mxu0 %v187
    %v244 = vpop.f32.mrf.mxu0
    %v245 = vadd.f32 0.0, %v244
    %v246 = vpop.f32.mrf.mxu0
    %v247 = vadd.f32 0.0, %v246
    %v248 = vpop.f32.mrf.mxu0
    %v249 = vadd.f32 0.0, %v248
    %v250 = vpop.f32.mrf.mxu0
    %v251 = vadd.f32 0.0, %v250
    %252 = vmatprep.mubr.bf16.mxu0 0
    %253 = vmatmul.mubr.bf16.gmra.mxu0 %v190
    %v254 = vpop.f32.mrf.mxu0
    %v255 = vadd.f32 0.0, %v254
    %v256 = vpop.f32.mrf.mxu0
    %v257 = vadd.f32 0.0, %v256
    %v258 = vpop.f32.mrf.mxu0
    %v259 = vadd.f32 0.0, %v258
    %v260 = vpop.f32.mrf.mxu0
    %v261 = vadd.f32 0.0, %v260
    %262 = vmatprep.mubr.bf16.mxu0 0
    %263 = vmatmul.mubr.bf16.gmra.mxu0 %v193
    %v264 = vpop.f32.mrf.mxu0
    %v265 = vadd.f32 0.0, %v264
    %v266 = vpop.f32.mrf.mxu0
    %v267 = vadd.f32 0.0, %v266
    %v268 = vpop.f32.mrf.mxu0
    %v269 = vadd.f32 0.0, %v268
    %v270 = vpop.f32.mrf.mxu0
    %v271 = vadd.f32 0.0, %v270
    %272 = vmatprep.mubr.bf16.mxu0 0
    %273 = vmatmul.mubr.bf16.gmra.mxu0 %v196
    %v274 = vpop.f32.mrf.mxu0
    %v275 = vadd.f32 0.0, %v274
    %v276 = vpop.f32.mrf.mxu0
    %v277 = vadd.f32 0.0, %v276
    %v278 = vpop.f32.mrf.mxu0
    %v279 = vadd.f32 0.0, %v278
    %v280 = vpop.f32.mrf.mxu0
    %v281 = vadd.f32 0.0, %v280
    %282 = vmatprep.mubr.bf16.mxu0 0
    %283 = vmatmul.mubr.bf16.gmra.mxu0 %v199
    %v284 = vpop.f32.mrf.mxu0
    %v285 = vadd.f32 0.0, %v284
    %v286 = vpop.f32.mrf.mxu0
    %v287 = vadd.f32 0.0, %v286
    %v288 = vpop.f32.mrf.mxu0
    %v289 = vadd.f32 0.0, %v288
    %v290 = vpop.f32.mrf.mxu0
    %v291 = vadd.f32 0.0, %v290
    %292 = vmatprep.mubr.bf16.mxu0 0
    %293 = vmatmul.mubr.bf16.gmra.mxu0 %v202
    %v294 = vpop.f32.mrf.mxu0
    %v295 = vadd.f32 0.0, %v294
    %v296 = vpop.f32.mrf.mxu0
    %v297 = vadd.f32 0.0, %v296
    %v298 = vpop.f32.mrf.mxu0
    %v299 = vadd.f32 0.0, %v298
    %v300 = vpop.f32.mrf.mxu0
    %v301 = vadd.f32 0.0, %v300
    %302 = vmatprep.mubr.bf16.mxu0 0
    %303 = vmatmul.mubr.bf16.gmra.mxu0 %v205
    %v304 = vpop.f32.mrf.mxu0
    %v305 = vadd.f32 0.0, %v304
    %v306 = vpop.f32.mrf.mxu0
    %v307 = vadd.f32 0.0, %v306
    %v308 = vpop.f32.mrf.mxu0
    %v309 = vadd.f32 0.0, %v308
    %v310 = vpop.f32.mrf.mxu0
    %v311 = vadd.f32 0.0, %v310
    %312 = vmatprep.mubr.bf16.mxu0 0
    %313 = vmatmul.mubr.bf16.gmra.mxu0 %v208
    %v314 = vpop.f32.mrf.mxu0
    %v315 = vadd.f32 0.0, %v314
    %v316 = vpop.f32.mrf.mxu0
    %v317 = vadd.f32 0.0, %v316
    %v318 = vpop.f32.mrf.mxu0
    %v319 = vadd.f32 0.0, %v318
    %v320 = vpop.f32.mrf.mxu0
    %v321 = vadd.f32 0.0, %v320
    %322 = vdwg.mxu0
    %323 = vmatprep.subr.bf16.mxu0 0
    %324 = vmatpush1.bf16.msra.mxu0 0
    %325 = vmatprep.subr.bf16.mxu0 0
    %326 = vmatpush1.bf16.msra.mxu0 0
    %327 = vmatprep.subr.bf16.mxu0 0
    %328 = vmatpush1.bf16.msra.mxu0 0
    %329 = vmatprep.subr.bf16.mxu0 0
    %330 = vmatpush1.bf16.msra.mxu0 0
    %331 = vmatprep.subr.bf16.mxu0 0
    %332 = vmatpush1.bf16.msra.mxu0 0
    %333 = vmatprep.subr.bf16.mxu0 0
    %334 = vmatpush1.bf16.msra.mxu0 0
    %335 = vmatprep.subr.bf16.mxu0 %v164
    %336 = vmatpush1.bf16.msra.mxu0 %v163
    %337 = vmatprep.subr.bf16.mxu0 %v156
    %338 = vmatpush1.bf16.msra.mxu0 %v155
    %339 = vmatprep.subr.bf16.mxu0 0
    %340 = vmatpush2.bf16.msra.mxu0 0
    %341 = vmatprep.subr.bf16.mxu0 0
    %342 = vmatpush2.bf16.msra.mxu0 0
    %343 = vmatprep.subr.bf16.mxu0 0
    %344 = vmatpush2.bf16.msra.mxu0 0
    %345 = vmatprep.subr.bf16.mxu0 0
    %346 = vmatpush2.bf16.msra.mxu0 0
    %347 = vmatprep.subr.bf16.mxu0 0
    %348 = vmatpush2.bf16.msra.mxu0 0
    %349 = vmatprep.subr.bf16.mxu0 0
    %350 = vmatpush2.bf16.msra.mxu0 0
    %351 = vmatprep.subr.bf16.mxu0 0
    %352 = vmatpush2.bf16.msra.mxu0 0
    %353 = vmatprep.subr.bf16.mxu0 0
    %354 = vmatpush2.bf16.msra.mxu0 0
    %355 = vmatprep.mubr.bf16.mxu0 0
    %356 = vmatmul.mubr.bf16.gmra.mxu0 %v187
    %v357 = vpop.f32.mrf.mxu0
    %v358 = vadd.f32 0.0, %v357
    %v359 = vpop.f32.mrf.mxu0
    %v360 = vadd.f32 0.0, %v359
    %v361 = vpop.f32.mrf.mxu0
    %v362 = vadd.f32 0.0, %v361
    %v363 = vpop.f32.mrf.mxu0
    %v364 = vadd.f32 0.0, %v363
    %365 = vmatprep.mubr.bf16.mxu0 0
    %366 = vmatmul.mubr.bf16.gmra.mxu0 %v190
    %v367 = vpop.f32.mrf.mxu0
    %v368 = vadd.f32 0.0, %v367
    %v369 = vpop.f32.mrf.mxu0
    %v370 = vadd.f32 0.0, %v369
    %v371 = vpop.f32.mrf.mxu0
    %v372 = vadd.f32 0.0, %v371
    %v373 = vpop.f32.mrf.mxu0
    %v374 = vadd.f32 0.0, %v373
    %375 = vmatprep.mubr.bf16.mxu0 0
    %376 = vmatmul.mubr.bf16.gmra.mxu0 %v193
    %v377 = vpop.f32.mrf.mxu0
    %v378 = vadd.f32 0.0, %v377
    %v379 = vpop.f32.mrf.mxu0
    %v380 = vadd.f32 0.0, %v379
    %v381 = vpop.f32.mrf.mxu0
    %v382 = vadd.f32 0.0, %v381
    %v383 = vpop.f32.mrf.mxu0
    %v384 = vadd.f32 0.0, %v383
    %385 = vmatprep.mubr.bf16.mxu0 0
    %386 = vmatmul.mubr.bf16.gmra.mxu0 %v196
    %v387 = vpop.f32.mrf.mxu0
    %v388 = vadd.f32 0.0, %v387
    %v389 = vpop.f32.mrf.mxu0
    %v390 = vadd.f32 0.0, %v389
    %v391 = vpop.f32.mrf.mxu0
    %v392 = vadd.f32 0.0, %v391
    %v393 = vpop.f32.mrf.mxu0
    %v394 = vadd.f32 0.0, %v393
    %395 = vmatprep.mubr.bf16.mxu0 0
    %396 = vmatmul.mubr.bf16.gmra.mxu0 %v199
    %v397 = vpop.f32.mrf.mxu0
    %v398 = vadd.f32 0.0, %v397
    %v399 = vpop.f32.mrf.mxu0
    %v400 = vadd.f32 0.0, %v399
    %v401 = vpop.f32.mrf.mxu0
    %v402 = vadd.f32 0.0, %v401
    %v403 = vpop.f32.mrf.mxu0
    %v404 = vadd.f32 0.0, %v403
    %405 = vmatprep.mubr.bf16.mxu0 0
    %406 = vmatmul.mubr.bf16.gmra.mxu0 %v202
    %v407 = vpop.f32.mrf.mxu0
    %v408 = vadd.f32 0.0, %v407
    %v409 = vpop.f32.mrf.mxu0
    %v410 = vadd.f32 0.0, %v409
    %v411 = vpop.f32.mrf.mxu0
    %v412 = vadd.f32 0.0, %v411
    %v413 = vpop.f32.mrf.mxu0
    %v414 = vadd.f32 0.0, %v413
    %415 = vmatprep.mubr.bf16.mxu0 0
    %416 = vmatmul.mubr.bf16.gmra.mxu0 %v205
    %v417 = vpop.f32.mrf.mxu0
    %v418 = vadd.f32 0.0, %v417
    %v419 = vpop.f32.mrf.mxu0
    %v420 = vadd.f32 0.0, %v419
    %v421 = vpop.f32.mrf.mxu0
    %v422 = vadd.f32 0.0, %v421
    %v423 = vpop.f32.mrf.mxu0
    %v424 = vadd.f32 0.0, %v423
    %425 = vmatprep.mubr.bf16.mxu0 0
    %426 = vmatmul.mubr.bf16.gmra.mxu0 %v208
    %v427 = vpop.f32.mrf.mxu0
    %v428 = vadd.f32 0.0, %v427
    %v429 = vpop.f32.mrf.mxu0
    %v430 = vadd.f32 0.0, %v429
    %v431 = vpop.f32.mrf.mxu0
    %v432 = vadd.f32 0.0, %v431
    %v433 = vpop.f32.mrf.mxu0
    %v434 = vadd.f32 0.0, %v433
    %435 = vdwg.mxu0
    %436 = vmatprep.subr.bf16.mxu0 0
    %437 = vmatpush1.bf16.msra.mxu0 0
    %438 = vmatprep.subr.bf16.mxu0 0
    %439 = vmatpush1.bf16.msra.mxu0 0
    %440 = vmatprep.subr.bf16.mxu0 0
    %441 = vmatpush1.bf16.msra.mxu0 0
    %442 = vmatprep.subr.bf16.mxu0 0
    %443 = vmatpush1.bf16.msra.mxu0 0
    %444 = vmatprep.subr.bf16.mxu0 0
    %445 = vmatpush1.bf16.msra.mxu0 0
    %446 = vmatprep.subr.bf16.mxu0 0
    %447 = vmatpush1.bf16.msra.mxu0 0
    %448 = vmatprep.subr.bf16.mxu0 %v166
    %449 = vmatpush1.bf16.msra.mxu0 %v165
    %450 = vmatprep.subr.bf16.mxu0 %v158
    %451 = vmatpush1.bf16.msra.mxu0 %v157
    %452 = vmatprep.subr.bf16.mxu0 0
    %453 = vmatpush2.bf16.msra.mxu0 0
    %454 = vmatprep.subr.bf16.mxu0 0
    %455 = vmatpush2.bf16.msra.mxu0 0
    %456 = vmatprep.subr.bf16.mxu0 0
    %457 = vmatpush2.bf16.msra.mxu0 0
    %458 = vmatprep.subr.bf16.mxu0 0
    %459 = vmatpush2.bf16.msra.mxu0 0
    %460 = vmatprep.subr.bf16.mxu0 0
    %461 = vmatpush2.bf16.msra.mxu0 0
    %462 = vmatprep.subr.bf16.mxu0 0
    %463 = vmatpush2.bf16.msra.mxu0 0
    %464 = vmatprep.subr.bf16.mxu0 0
    %465 = vmatpush2.bf16.msra.mxu0 0
    %466 = vmatprep.subr.bf16.mxu0 0
    %467 = vmatpush2.bf16.msra.mxu0 0
    %468 = vmatprep.mubr.bf16.mxu0 0
    %469 = vmatmul.mubr.bf16.gmra.mxu0 %v187
    %v470 = vpop.f32.mrf.mxu0
    %v471 = vadd.f32 0.0, %v470
    %v472 = vpop.f32.mrf.mxu0
    %v473 = vadd.f32 0.0, %v472
    %v474 = vpop.f32.mrf.mxu0
    %v475 = vadd.f32 0.0, %v474
    %v476 = vpop.f32.mrf.mxu0
    %v477 = vadd.f32 0.0, %v476
    %478 = vmatprep.mubr.bf16.mxu0 0
    %479 = vmatmul.mubr.bf16.gmra.mxu0 %v190
    %v480 = vpop.f32.mrf.mxu0
    %v481 = vadd.f32 0.0, %v480
    %v482 = vpop.f32.mrf.mxu0
    %v483 = vadd.f32 0.0, %v482
    %v484 = vpop.f32.mrf.mxu0
    %v485 = vadd.f32 0.0, %v484
    %v486 = vpop.f32.mrf.mxu0
    %v487 = vadd.f32 0.0, %v486
    %488 = vmatprep.mubr.bf16.mxu0 0
    %489 = vmatmul.mubr.bf16.gmra.mxu0 %v193
    %v490 = vpop.f32.mrf.mxu0
    %v491 = vadd.f32 0.0, %v490
    %v492 = vpop.f32.mrf.mxu0
    %v493 = vadd.f32 0.0, %v492
    %v494 = vpop.f32.mrf.mxu0
    %v495 = vadd.f32 0.0, %v494
    %v496 = vpop.f32.mrf.mxu0
    %v497 = vadd.f32 0.0, %v496
    %498 = vmatprep.mubr.bf16.mxu0 0
    %499 = vmatmul.mubr.bf16.gmra.mxu0 %v196
    %v500 = vpop.f32.mrf.mxu0
    %v501 = vadd.f32 0.0, %v500
    %v502 = vpop.f32.mrf.mxu0
    %v503 = vadd.f32 0.0, %v502
    %v504 = vpop.f32.mrf.mxu0
    %v505 = vadd.f32 0.0, %v504
    %v506 = vpop.f32.mrf.mxu0
    %v507 = vadd.f32 0.0, %v506
    %508 = vmatprep.mubr.bf16.mxu0 0
    %509 = vmatmul.mubr.bf16.gmra.mxu0 %v199
    %v510 = vpop.f32.mrf.mxu0
    %v511 = vadd.f32 0.0, %v510
    %v512 = vpop.f32.mrf.mxu0
    %v513 = vadd.f32 0.0, %v512
    %v514 = vpop.f32.mrf.mxu0
    %v515 = vadd.f32 0.0, %v514
    %v516 = vpop.f32.mrf.mxu0
    %v517 = vadd.f32 0.0, %v516
    %518 = vmatprep.mubr.bf16.mxu0 0
    %519 = vmatmul.mubr.bf16.gmra.mxu0 %v202
    %v520 = vpop.f32.mrf.mxu0
    %v521 = vadd.f32 0.0, %v520
    %v522 = vpop.f32.mrf.mxu0
    %v523 = vadd.f32 0.0, %v522
    %v524 = vpop.f32.mrf.mxu0
    %v525 = vadd.f32 0.0, %v524
    %v526 = vpop.f32.mrf.mxu0
    %v527 = vadd.f32 0.0, %v526
    %528 = vmatprep.mubr.bf16.mxu0 0
    %529 = vmatmul.mubr.bf16.gmra.mxu0 %v205
    %v530 = vpop.f32.mrf.mxu0
    %v531 = vadd.f32 0.0, %v530
    %v532 = vpop.f32.mrf.mxu0
    %v533 = vadd.f32 0.0, %v532
    %v534 = vpop.f32.mrf.mxu0
    %v535 = vadd.f32 0.0, %v534
    %v536 = vpop.f32.mrf.mxu0
    %v537 = vadd.f32 0.0, %v536
    %538 = vmatprep.mubr.bf16.mxu0 0
    %539 = vmatmul.mubr.bf16.gmra.mxu0 %v208
    %v540 = vpop.f32.mrf.mxu0
    %v541 = vadd.f32 0.0, %v540
    %v542 = vpop.f32.mrf.mxu0
    %v543 = vadd.f32 0.0, %v542
    %v544 = vpop.f32.mrf.mxu0
    %v545 = vadd.f32 0.0, %v544
    %v546 = vpop.f32.mrf.mxu0
    %v547 = vadd.f32 0.0, %v546
    %548 = vdwg.mxu0
    %549 = vmatprep.subr.bf16.mxu0 0
    %550 = vmatpush1.bf16.msra.mxu0 0
    %551 = vmatprep.subr.bf16.mxu0 0
    %552 = vmatpush1.bf16.msra.mxu0 0
    %553 = vmatprep.subr.bf16.mxu0 0
    %554 = vmatpush1.bf16.msra.mxu0 0
    %555 = vmatprep.subr.bf16.mxu0 0
    %556 = vmatpush1.bf16.msra.mxu0 0
    %557 = vmatprep.subr.bf16.mxu0 0
    %558 = vmatpush1.bf16.msra.mxu0 0
    %559 = vmatprep.subr.bf16.mxu0 0
    %560 = vmatpush1.bf16.msra.mxu0 0
    %561 = vmatprep.subr.bf16.mxu0 %v168
    %562 = vmatpush1.bf16.msra.mxu0 %v167
    %563 = vmatprep.subr.bf16.mxu0 %v160
    %564 = vmatpush1.bf16.msra.mxu0 %v159
    %565 = vmatprep.subr.bf16.mxu0 0
    %566 = vmatpush2.bf16.msra.mxu0 0
    %567 = vmatprep.subr.bf16.mxu0 0
    %568 = vmatpush2.bf16.msra.mxu0 0
    %569 = vmatprep.subr.bf16.mxu0 0
    %570 = vmatpush2.bf16.msra.mxu0 0
    %571 = vmatprep.subr.bf16.mxu0 0
    %572 = vmatpush2.bf16.msra.mxu0 0
    %573 = vmatprep.subr.bf16.mxu0 0
    %574 = vmatpush2.bf16.msra.mxu0 0
    %575 = vmatprep.subr.bf16.mxu0 0
    %576 = vmatpush2.bf16.msra.mxu0 0
    %577 = vmatprep.subr.bf16.mxu0 0
    %578 = vmatpush2.bf16.msra.mxu0 0
    %579 = vmatprep.subr.bf16.mxu0 0
    %580 = vmatpush2.bf16.msra.mxu0 0
    %581 = vmatprep.mubr.bf16.mxu0 0
    %582 = vmatmul.mubr.bf16.gmra.mxu0 %v187
    %v583 = vpop.f32.mrf.mxu0
    %v584 = vadd.f32 0.0, %v583
    %v585 = vpop.f32.mrf.mxu0
    %v586 = vadd.f32 0.0, %v585
    %v587 = vpop.f32.mrf.mxu0
    %v588 = vadd.f32 0.0, %v587
    %v589 = vpop.f32.mrf.mxu0
    %v590 = vadd.f32 0.0, %v589
    %591 = vmatprep.mubr.bf16.mxu0 0
    %592 = vmatmul.mubr.bf16.gmra.mxu0 %v190
    %v593 = vpop.f32.mrf.mxu0
    %v594 = vadd.f32 0.0, %v593
    %v595 = vpop.f32.mrf.mxu0
    %v596 = vadd.f32 0.0, %v595
    %v597 = vpop.f32.mrf.mxu0
    %v598 = vadd.f32 0.0, %v597
    %v599 = vpop.f32.mrf.mxu0
    %v600 = vadd.f32 0.0, %v599
    %601 = vmatprep.mubr.bf16.mxu0 0
    %602 = vmatmul.mubr.bf16.gmra.mxu0 %v193
    %v603 = vpop.f32.mrf.mxu0
    %v604 = vadd.f32 0.0, %v603
    %v605 = vpop.f32.mrf.mxu0
    %v606 = vadd.f32 0.0, %v605
    %v607 = vpop.f32.mrf.mxu0
    %v608 = vadd.f32 0.0, %v607
    %v609 = vpop.f32.mrf.mxu0
    %v610 = vadd.f32 0.0, %v609
    %611 = vmatprep.mubr.bf16.mxu0 0
    %612 = vmatmul.mubr.bf16.gmra.mxu0 %v196
    %v613 = vpop.f32.mrf.mxu0
    %v614 = vadd.f32 0.0, %v613
    %v615 = vpop.f32.mrf.mxu0
    %v616 = vadd.f32 0.0, %v615
    %v617 = vpop.f32.mrf.mxu0
    %v618 = vadd.f32 0.0, %v617
    %v619 = vpop.f32.mrf.mxu0
    %v620 = vadd.f32 0.0, %v619
    %621 = vmatprep.mubr.bf16.mxu0 0
    %622 = vmatmul.mubr.bf16.gmra.mxu0 %v199
    %v623 = vpop.f32.mrf.mxu0
    %v624 = vadd.f32 0.0, %v623
    %v625 = vpop.f32.mrf.mxu0
    %v626 = vadd.f32 0.0, %v625
    %v627 = vpop.f32.mrf.mxu0
    %v628 = vadd.f32 0.0, %v627
    %v629 = vpop.f32.mrf.mxu0
    %v630 = vadd.f32 0.0, %v629
    %631 = vmatprep.mubr.bf16.mxu0 0
    %632 = vmatmul.mubr.bf16.gmra.mxu0 %v202
    %v633 = vpop.f32.mrf.mxu0
    %v634 = vadd.f32 0.0, %v633
    %v635 = vpop.f32.mrf.mxu0
    %v636 = vadd.f32 0.0, %v635
    %v637 = vpop.f32.mrf.mxu0
    %v638 = vadd.f32 0.0, %v637
    %v639 = vpop.f32.mrf.mxu0
    %v640 = vadd.f32 0.0, %v639
    %641 = vmatprep.mubr.bf16.mxu0 0
    %642 = vmatmul.mubr.bf16.gmra.mxu0 %v205
    %v643 = vpop.f32.mrf.mxu0
    %v644 = vadd.f32 0.0, %v643
    %v645 = vpop.f32.mrf.mxu0
    %v646 = vadd.f32 0.0, %v645
    %v647 = vpop.f32.mrf.mxu0
    %v648 = vadd.f32 0.0, %v647
    %v649 = vpop.f32.mrf.mxu0
    %v650 = vadd.f32 0.0, %v649
    %651 = vmatprep.mubr.bf16.mxu0 0
    %652 = vmatmul.mubr.bf16.gmra.mxu0 %v208
    %v653 = vpop.f32.mrf.mxu0
    %v654 = vadd.f32 0.0, %v653
    %v655 = vpop.f32.mrf.mxu0
    %v656 = vadd.f32 0.0, %v655
    %v657 = vpop.f32.mrf.mxu0
    %v658 = vadd.f32 0.0, %v657
    %v659 = vpop.f32.mrf.mxu0
    %v660 = vadd.f32 0.0, %v659
    %661 = vdwg.mxu0
    %v662 = vpack.c.bf16 %v249, %v245
    %v663 = vpack.c.bf16 %v251, %v247
    %v664 = vpack.c.bf16 %v362, %v358
    %v665 = vpack.c.bf16 %v364, %v360
    %v666 = vpack.c.bf16 %v475, %v471
    %v667 = vpack.c.bf16 %v477, %v473
    %v668 = vpack.c.bf16 %v588, %v584
    %v669 = vpack.c.bf16 %v590, %v586
    %v670 = vpack.c.bf16 %v259, %v255
    %v671 = vpack.c.bf16 %v261, %v257
    %v672 = vpack.c.bf16 %v372, %v368
    %v673 = vpack.c.bf16 %v374, %v370
    %v674 = vpack.c.bf16 %v485, %v481
    %v675 = vpack.c.bf16 %v487, %v483
    %v676 = vpack.c.bf16 %v598, %v594
    %v677 = vpack.c.bf16 %v600, %v596
    %v678 = vpack.c.bf16 %v269, %v265
    %v679 = vpack.c.bf16 %v271, %v267
    %v680 = vpack.c.bf16 %v382, %v378
    %v681 = vpack.c.bf16 %v384, %v380
    %v682 = vpack.c.bf16 %v495, %v491
    %v683 = vpack.c.bf16 %v497, %v493
    %v684 = vpack.c.bf16 %v608, %v604
    %v685 = vpack.c.bf16 %v610, %v606
    %v686 = vpack.c.bf16 %v279, %v275
    %v687 = vpack.c.bf16 %v281, %v277
    %v688 = vpack.c.bf16 %v392, %v388
    %v689 = vpack.c.bf16 %v394, %v390
    %v690 = vpack.c.bf16 %v505, %v501
    %v691 = vpack.c.bf16 %v507, %v503
    %v692 = vpack.c.bf16 %v618, %v614
    %v693 = vpack.c.bf16 %v620, %v616
    %v694 = vpack.c.bf16 %v289, %v285
    %v695 = vpack.c.bf16 %v291, %v287
    %v696 = vpack.c.bf16 %v402, %v398
    %v697 = vpack.c.bf16 %v404, %v400
    %v698 = vpack.c.bf16 %v515, %v511
    %v699 = vpack.c.bf16 %v517, %v513
    %v700 = vpack.c.bf16 %v628, %v624
    %v701 = vpack.c.bf16 %v630, %v626
    %v702 = vpack.c.bf16 %v299, %v295
    %v703 = vpack.c.bf16 %v301, %v297
    %v704 = vpack.c.bf16 %v412, %v408
    %v705 = vpack.c.bf16 %v414, %v410
    %v706 = vpack.c.bf16 %v525, %v521
    %v707 = vpack.c.bf16 %v527, %v523
    %v708 = vpack.c.bf16 %v638, %v634
    %v709 = vpack.c.bf16 %v640, %v636
    %v710 = vpack.c.bf16 %v309, %v305
    %v711 = vpack.c.bf16 %v311, %v307
    %v712 = vpack.c.bf16 %v422, %v418
    %v713 = vpack.c.bf16 %v424, %v420
    %v714 = vpack.c.bf16 %v535, %v531
    %v715 = vpack.c.bf16 %v537, %v533
    %v716 = vpack.c.bf16 %v648, %v644
    %v717 = vpack.c.bf16 %v650, %v646
    %v718 = vpack.c.bf16 %v319, %v315
    %v719 = vpack.c.bf16 %v321, %v317
    %v720 = vpack.c.bf16 %v432, %v428
    %v721 = vpack.c.bf16 %v434, %v430
    %v722 = vpack.c.bf16 %v545, %v541
    %v723 = vpack.c.bf16 %v547, %v543
    %v724 = vpack.c.bf16 %v658, %v654
    %v725 = vpack.c.bf16 %v660, %v656
    %v790 = vunpack.c.l.b16 %v662
    %v791 = vunpack.c.l.b16 %v663
    %v792 = vunpack.c.l.b16 %v664
    %v793 = vunpack.c.l.b16 %v665
    %v794 = vunpack.c.l.b16 %v666
    %v795 = vunpack.c.l.b16 %v667
    %v796 = vunpack.c.l.b16 %v668
    %v797 = vunpack.c.l.b16 %v669
    %v798 = vunpack.c.h.b16 %v662
    %v799 = vunpack.c.h.b16 %v663
    %v800 = vunpack.c.h.b16 %v664
    %v801 = vunpack.c.h.b16 %v665
    %v802 = vunpack.c.h.b16 %v666
    %v803 = vunpack.c.h.b16 %v667
    %v804 = vunpack.c.h.b16 %v668
    %v805 = vunpack.c.h.b16 %v669
    %v806 = vunpack.c.l.b16 %v670
    %v807 = vunpack.c.l.b16 %v671
    %v808 = vunpack.c.l.b16 %v672
    %v809 = vunpack.c.l.b16 %v673
    %v810 = vunpack.c.l.b16 %v674
    %v811 = vunpack.c.l.b16 %v675
    %v812 = vunpack.c.l.b16 %v676
    %v813 = vunpack.c.l.b16 %v677
    %v814 = vunpack.c.h.b16 %v670
    %v815 = vunpack.c.h.b16 %v671
    %v816 = vunpack.c.h.b16 %v672
    %v817 = vunpack.c.h.b16 %v673
    %v818 = vunpack.c.h.b16 %v674
    %v819 = vunpack.c.h.b16 %v675
    %v820 = vunpack.c.h.b16 %v676
    %v821 = vunpack.c.h.b16 %v677
    %v822 = vunpack.c.l.b16 %v678
    %v823 = vunpack.c.l.b16 %v679
    %v824 = vunpack.c.l.b16 %v680
    %v825 = vunpack.c.l.b16 %v681
    %v826 = vunpack.c.l.b16 %v682
    %v827 = vunpack.c.l.b16 %v683
    %v828 = vunpack.c.l.b16 %v684
    %v829 = vunpack.c.l.b16 %v685
    %v830 = vunpack.c.h.b16 %v678
    %v831 = vunpack.c.h.b16 %v679
    %v832 = vunpack.c.h.b16 %v680
    %v833 = vunpack.c.h.b16 %v681
    %v834 = vunpack.c.h.b16 %v682
    %v835 = vunpack.c.h.b16 %v683
    %v836 = vunpack.c.h.b16 %v684
    %v837 = vunpack.c.h.b16 %v685
    %v838 = vunpack.c.l.b16 %v686
    %v839 = vunpack.c.l.b16 %v687
    %v840 = vunpack.c.l.b16 %v688
    %v841 = vunpack.c.l.b16 %v689
    %v842 = vunpack.c.l.b16 %v690
    %v843 = vunpack.c.l.b16 %v691
    %v844 = vunpack.c.l.b16 %v692
    %v845 = vunpack.c.l.b16 %v693
    %v846 = vunpack.c.h.b16 %v686
    %v847 = vunpack.c.h.b16 %v687
    %v848 = vunpack.c.h.b16 %v688
    %v849 = vunpack.c.h.b16 %v689
    %v850 = vunpack.c.h.b16 %v690
    %v851 = vunpack.c.h.b16 %v691
    %v852 = vunpack.c.h.b16 %v692
    %v853 = vunpack.c.h.b16 %v693
    %v854 = vunpack.c.l.b16 %v694
    %v855 = vunpack.c.l.b16 %v695
    %v856 = vunpack.c.l.b16 %v696
    %v857 = vunpack.c.l.b16 %v697
    %v858 = vunpack.c.l.b16 %v698
    %v859 = vunpack.c.l.b16 %v699
    %v860 = vunpack.c.l.b16 %v700
    %v861 = vunpack.c.l.b16 %v701
    %v862 = vunpack.c.h.b16 %v694
    %v863 = vunpack.c.h.b16 %v695
    %v864 = vunpack.c.h.b16 %v696
    %v865 = vunpack.c.h.b16 %v697
    %v866 = vunpack.c.h.b16 %v698
    %v867 = vunpack.c.h.b16 %v699
    %v868 = vunpack.c.h.b16 %v700
    %v869 = vunpack.c.h.b16 %v701
    %v870 = vunpack.c.l.b16 %v702
    %v871 = vunpack.c.l.b16 %v703
    %v872 = vunpack.c.l.b16 %v704
    %v873 = vunpack.c.l.b16 %v705
    %v874 = vunpack.c.l.b16 %v706
    %v875 = vunpack.c.l.b16 %v707
    %v876 = vunpack.c.l.b16 %v708
    %v877 = vunpack.c.l.b16 %v709
    %v878 = vunpack.c.h.b16 %v702
    %v879 = vunpack.c.h.b16 %v703
    %v880 = vunpack.c.h.b16 %v704
    %v881 = vunpack.c.h.b16 %v705
    %v882 = vunpack.c.h.b16 %v706
    %v883 = vunpack.c.h.b16 %v707
    %v884 = vunpack.c.h.b16 %v708
    %v885 = vunpack.c.h.b16 %v709
    %v886 = vunpack.c.l.b16 %v710
    %v887 = vunpack.c.l.b16 %v711
    %v888 = vunpack.c.l.b16 %v712
    %v889 = vunpack.c.l.b16 %v713
    %v890 = vunpack.c.l.b16 %v714
    %v891 = vunpack.c.l.b16 %v715
    %v892 = vunpack.c.l.b16 %v716
    %v893 = vunpack.c.l.b16 %v717
    %v894 = vunpack.c.h.b16 %v710
    %v895 = vunpack.c.h.b16 %v711
    %v896 = vunpack.c.h.b16 %v712
    %v897 = vunpack.c.h.b16 %v713
    %v898 = vunpack.c.h.b16 %v714
    %v899 = vunpack.c.h.b16 %v715
    %v900 = vunpack.c.h.b16 %v716
    %v901 = vunpack.c.h.b16 %v717
    %v902 = vunpack.c.l.b16 %v718
    %v903 = vunpack.c.l.b16 %v719
    %v904 = vunpack.c.l.b16 %v720
    %v905 = vunpack.c.l.b16 %v721
    %v906 = vunpack.c.l.b16 %v722
    %v907 = vunpack.c.l.b16 %v723
    %v908 = vunpack.c.l.b16 %v724
    %v909 = vunpack.c.l.b16 %v725
    %v910 = vunpack.c.h.b16 %v718
    %v911 = vunpack.c.h.b16 %v719
    %v912 = vunpack.c.h.b16 %v720
    %v913 = vunpack.c.h.b16 %v721
    %v914 = vunpack.c.h.b16 %v722
    %v915 = vunpack.c.h.b16 %v723
    %v916 = vunpack.c.h.b16 %v724
    %v917 = vunpack.c.h.b16 %v725
    %v918 = vpack.c.b16 %v791, %v790
    %v919 = vpack.c.b16 %v793, %v792
    %v920 = vpack.c.b16 %v795, %v794
    %v921 = vpack.c.b16 %v797, %v796
    %v922 = vpack.c.b16 %v799, %v798
    %v923 = vpack.c.b16 %v801, %v800
    %v924 = vpack.c.b16 %v803, %v802
    %v925 = vpack.c.b16 %v805, %v804
    %v926 = vpack.c.b16 %v807, %v806
    %v927 = vpack.c.b16 %v809, %v808
    %v928 = vpack.c.b16 %v811, %v810
    %v929 = vpack.c.b16 %v813, %v812
    %v930 = vpack.c.b16 %v815, %v814
    %v931 = vpack.c.b16 %v817, %v816
    %v932 = vpack.c.b16 %v819, %v818
    %v933 = vpack.c.b16 %v821, %v820
    %v934 = vpack.c.b16 %v823, %v822
    %v935 = vpack.c.b16 %v825, %v824
    %v936 = vpack.c.b16 %v827, %v826
    %v937 = vpack.c.b16 %v829, %v828
    %v938 = vpack.c.b16 %v831, %v830
    %v939 = vpack.c.b16 %v833, %v832
    %v940 = vpack.c.b16 %v835, %v834
    %v941 = vpack.c.b16 %v837, %v836
    %v942 = vpack.c.b16 %v839, %v838
    %v943 = vpack.c.b16 %v841, %v840
    %v944 = vpack.c.b16 %v843, %v842
    %v945 = vpack.c.b16 %v845, %v844
    %v946 = vpack.c.b16 %v847, %v846
    %v947 = vpack.c.b16 %v849, %v848
    %v948 = vpack.c.b16 %v851, %v850
    %v949 = vpack.c.b16 %v853, %v852
    %v950 = vpack.c.b16 %v855, %v854
    %v951 = vpack.c.b16 %v857, %v856
    %v952 = vpack.c.b16 %v859, %v858
    %v953 = vpack.c.b16 %v861, %v860
    %v954 = vpack.c.b16 %v863, %v862
    %v955 = vpack.c.b16 %v865, %v864
    %v956 = vpack.c.b16 %v867, %v866
    %v957 = vpack.c.b16 %v869, %v868
    %v958 = vpack.c.b16 %v871, %v870
    %v959 = vpack.c.b16 %v873, %v872
    %v960 = vpack.c.b16 %v875, %v874
    %v961 = vpack.c.b16 %v877, %v876
    %v962 = vpack.c.b16 %v879, %v878
    %v963 = vpack.c.b16 %v881, %v880
    %v964 = vpack.c.b16 %v883, %v882
    %v965 = vpack.c.b16 %v885, %v884
    %v966 = vpack.c.b16 %v887, %v886
    %v967 = vpack.c.b16 %v889, %v888
    %v968 = vpack.c.b16 %v891, %v890
    %v969 = vpack.c.b16 %v893, %v892
    %v970 = vpack.c.b16 %v895, %v894
    %v971 = vpack.c.b16 %v897, %v896
    %v972 = vpack.c.b16 %v899, %v898
    %v973 = vpack.c.b16 %v901, %v900
    %v974 = vpack.c.b16 %v903, %v902
    %v975 = vpack.c.b16 %v905, %v904
    %v976 = vpack.c.b16 %v907, %v906
    %v977 = vpack.c.b16 %v909, %v908
    %v978 = vpack.c.b16 %v911, %v910
    %v979 = vpack.c.b16 %v913, %v912
    %v980 = vpack.c.b16 %v915, %v914
    %v981 = vpack.c.b16 %v917, %v916
    %1046 = vst [vmem:[#allocation5] sm:$0xff] %v918
    %1047 = vst [vmem:[#allocation5 + $0x8] sm:$0xff] %v919
    %1048 = vst [vmem:[#allocation5 + $0x10] sm:$0xff] %v920
    %1049 = vst [vmem:[#allocation5 + $0x18] sm:$0xff] %v921
    %1050 = vst [vmem:[#allocation5 + $0x20] sm:$0xff] %v922
    %1051 = vst [vmem:[#allocation5 + $0x28] sm:$0xff] %v923
    %1052 = vst [vmem:[#allocation5 + $0x30] sm:$0xff] %v924
    %1053 = vst [vmem:[#allocation5 + $0x38] sm:$0xff] %v925
    %1054 = vst [vmem:[#allocation5 + $0x40] sm:$0xff] %v926
    %1055 = vst [vmem:[#allocation5 + $0x48] sm:$0xff] %v927
    %1056 = vst [vmem:[#allocation5 + $0x50] sm:$0xff] %v928
    %1057 = vst [vmem:[#allocation5 + $0x58] sm:$0xff] %v929
    %1058 = vst [vmem:[#allocation5 + $0x60] sm:$0xff] %v930
    %1059 = vst [vmem:[#allocation5 + $0x68] sm:$0xff] %v931
    %1060 = vst [vmem:[#allocation5 + $0x70] sm:$0xff] %v932
    %1061 = vst [vmem:[#allocation5 + $0x78] sm:$0xff] %v933
    %1062 = vst [vmem:[#allocation5 + $0x80] sm:$0xff] %v934
    %1063 = vst [vmem:[#allocation5 + $0x88] sm:$0xff] %v935
    %1064 = vst [vmem:[#allocation5 + $0x90] sm:$0xff] %v936
    %1065 = vst [vmem:[#allocation5 + $0x98] sm:$0xff] %v937
    %1066 = vst [vmem:[#allocation5 + $0xa0] sm:$0xff] %v938
    %1067 = vst [vmem:[#allocation5 + $0xa8] sm:$0xff] %v939
    %1068 = vst [vmem:[#allocation5 + $0xb0] sm:$0xff] %v940
    %1069 = vst [vmem:[#allocation5 + $0xb8] sm:$0xff] %v941
    %1070 = vst [vmem:[#allocation5 + $0xc0] sm:$0xff] %v942
    %1071 = vst [vmem:[#allocation5 + $0xc8] sm:$0xff] %v943
    %1072 = vst [vmem:[#allocation5 + $0xd0] sm:$0xff] %v944
    %1073 = vst [vmem:[#allocation5 + $0xd8] sm:$0xff] %v945
    %1074 = vst [vmem:[#allocation5 + $0xe0] sm:$0xff] %v946
    %1075 = vst [vmem:[#allocation5 + $0xe8] sm:$0xff] %v947
    %1076 = vst [vmem:[#allocation5 + $0xf0] sm:$0xff] %v948
    %1077 = vst [vmem:[#allocation5 + $0xf8] sm:$0xff] %v949
    %1078 = vst [vmem:[#allocation5 + $0x100] sm:$0xff] %v950
    %1079 = vst [vmem:[#allocation5 + $0x108] sm:$0xff] %v951
    %1080 = vst [vmem:[#allocation5 + $0x110] sm:$0xff] %v952
    %1081 = vst [vmem:[#allocation5 + $0x118] sm:$0xff] %v953
    %1082 = vst [vmem:[#allocation5 + $0x120] sm:$0xff] %v954
    %1083 = vst [vmem:[#allocation5 + $0x128] sm:$0xff] %v955
    %1084 = vst [vmem:[#allocation5 + $0x130] sm:$0xff] %v956
    %1085 = vst [vmem:[#allocation5 + $0x138] sm:$0xff] %v957
    %1086 = vst [vmem:[#allocation5 + $0x140] sm:$0xff] %v958
    %1087 = vst [vmem:[#allocation5 + $0x148] sm:$0xff] %v959
    %1088 = vst [vmem:[#allocation5 + $0x150] sm:$0xff] %v960
    %1089 = vst [vmem:[#allocation5 + $0x158] sm:$0xff] %v961
    %1090 = vst [vmem:[#allocation5 + $0x160] sm:$0xff] %v962
    %1091 = vst [vmem:[#allocation5 + $0x168] sm:$0xff] %v963
    %1092 = vst [vmem:[#allocation5 + $0x170] sm:$0xff] %v964
    %1093 = vst [vmem:[#allocation5 + $0x178] sm:$0xff] %v965
    %1094 = vst [vmem:[#allocation5 + $0x180] sm:$0xff] %v966
    %1095 = vst [vmem:[#allocation5 + $0x188] sm:$0xff] %v967
    %1096 = vst [vmem:[#allocation5 + $0x190] sm:$0xff] %v968
    %1097 = vst [vmem:[#allocation5 + $0x198] sm:$0xff] %v969
    %1098 = vst [vmem:[#allocation5 + $0x1a0] sm:$0xff] %v970
    %1099 = vst [vmem:[#allocation5 + $0x1a8] sm:$0xff] %v971
    %1100 = vst [vmem:[#allocation5 + $0x1b0] sm:$0xff] %v972
    %1101 = vst [vmem:[#allocation5 + $0x1b8] sm:$0xff] %v973
    %1102 = vst [vmem:[#allocation5 + $0x1c0] sm:$0xff] %v974
    %1103 = vst [vmem:[#allocation5 + $0x1c8] sm:$0xff] %v975
    %1104 = vst [vmem:[#allocation5 + $0x1d0] sm:$0xff] %v976
    %1105 = vst [vmem:[#allocation5 + $0x1d8] sm:$0xff] %v977
    %1106 = vst [vmem:[#allocation5 + $0x1e0] sm:$0xff] %v978
    %1107 = vst [vmem:[#allocation5 + $0x1e8] sm:$0xff] %v979
    %1108 = vst [vmem:[#allocation5 + $0x1f0] sm:$0xff] %v980
    %1109 = vst [vmem:[#allocation5 + $0x1f8] sm:$0xff] %v981
    %v1110 = vld [vmem:[%s2] sm:$0xf]
    %v1111 = vld [vmem:[%s2 + $0x4] sm:$0xf]
    %v1112 = vld [vmem:[%s2 + $0x8] sm:$0xf]
    %v1113 = vld [vmem:[%s2 + $0xc] sm:$0xf]
    %v1118 = vunpack.c.l.b16 %v1110
    %v1119 = vunpack.c.l.b16 %v1111
    %v1120 = vunpack.c.l.b16 %v1112
    %v1121 = vunpack.c.l.b16 %v1113
    %v1122 = vpack.c.b16 %v1119, %v1118
    %v1123 = vpack.c.b16 %v1121, %v1120
    %1126 = vmatprep.subr.bf16.mxu0 0
    %1127 = vmatpush1.bf16.msra.mxu0 0
    %1128 = vmatprep.subr.bf16.mxu0 0
    %1129 = vmatpush1.bf16.msra.mxu0 0
    %1130 = vmatprep.subr.bf16.mxu0 0
    %1131 = vmatpush1.bf16.msra.mxu0 0
    %1132 = vmatprep.subr.bf16.mxu0 0
    %1133 = vmatpush1.bf16.msra.mxu0 0
    %1134 = vmatprep.subr.bf16.mxu0 0
    %1135 = vmatpush1.bf16.msra.mxu0 0
    %1136 = vmatprep.subr.bf16.mxu0 0
    %1137 = vmatpush1.bf16.msra.mxu0 0
    %1138 = vmatprep.subr.bf16.mxu0 0
    %1139 = vmatpush1.bf16.msra.mxu0 %v1123
    %1140 = vmatprep.subr.bf16.mxu0 0
    %1141 = vmatpush1.bf16.msra.mxu0 %v1122
    %1142 = vmatprep.subr.bf16.mxu0 0
    %1143 = vmatpush2.bf16.msra.mxu0 0
    %1144 = vmatprep.subr.bf16.mxu0 0
    %1145 = vmatpush2.bf16.msra.mxu0 0
    %1146 = vmatprep.subr.bf16.mxu0 0
    %1147 = vmatpush2.bf16.msra.mxu0 0
    %1148 = vmatprep.subr.bf16.mxu0 0
    %1149 = vmatpush2.bf16.msra.mxu0 0
    %1150 = vmatprep.subr.bf16.mxu0 0
    %1151 = vmatpush2.bf16.msra.mxu0 0
    %1152 = vmatprep.subr.bf16.mxu0 0
    %1153 = vmatpush2.bf16.msra.mxu0 0
    %1154 = vmatprep.subr.bf16.mxu0 0
    %1155 = vmatpush2.bf16.msra.mxu0 0
    %1156 = vmatprep.subr.bf16.mxu0 0
    %1157 = vmatpush2.bf16.msra.mxu0 0
    %1158 = vmatprep.mubr.bf16.mxu0 0
    %1159 = vmatmul.mubr.bf16.gmra.mxu0 %v187
    %v1160 = vpop.f32.mrf.mxu0
    %v1161 = vadd.f32 0.0, %v1160
    %v1162 = vpop.f32.mrf.mxu0
    %v1163 = vpop.f32.mrf.mxu0
    %v1164 = vadd.f32 0.0, %v1163
    %v1165 = vpop.f32.mrf.mxu0
    %1166 = vmatprep.mubr.bf16.mxu0 0
    %1167 = vmatmul.mubr.bf16.gmra.mxu0 %v190
    %v1168 = vpop.f32.mrf.mxu0
    %v1169 = vadd.f32 0.0, %v1168
    %v1170 = vpop.f32.mrf.mxu0
    %v1171 = vpop.f32.mrf.mxu0
    %v1172 = vadd.f32 0.0, %v1171
    %v1173 = vpop.f32.mrf.mxu0
    %1174 = vmatprep.mubr.bf16.mxu0 0
    %1175 = vmatmul.mubr.bf16.gmra.mxu0 %v193
    %v1176 = vpop.f32.mrf.mxu0
    %v1177 = vadd.f32 0.0, %v1176
    %v1178 = vpop.f32.mrf.mxu0
    %v1179 = vpop.f32.mrf.mxu0
    %v1180 = vadd.f32 0.0, %v1179
    %v1181 = vpop.f32.mrf.mxu0
    %1182 = vmatprep.mubr.bf16.mxu0 0
    %1183 = vmatmul.mubr.bf16.gmra.mxu0 %v196
    %v1184 = vpop.f32.mrf.mxu0
    %v1185 = vadd.f32 0.0, %v1184
    %v1186 = vpop.f32.mrf.mxu0
    %v1187 = vpop.f32.mrf.mxu0
    %v1188 = vadd.f32 0.0, %v1187
    %v1189 = vpop.f32.mrf.mxu0
    %1190 = vmatprep.mubr.bf16.mxu0 0
    %1191 = vmatmul.mubr.bf16.gmra.mxu0 %v199
    %v1192 = vpop.f32.mrf.mxu0
    %v1193 = vadd.f32 0.0, %v1192
    %v1194 = vpop.f32.mrf.mxu0
    %v1195 = vpop.f32.mrf.mxu0
    %v1196 = vadd.f32 0.0, %v1195
    %v1197 = vpop.f32.mrf.mxu0
    %1198 = vmatprep.mubr.bf16.mxu0 0
    %1199 = vmatmul.mubr.bf16.gmra.mxu0 %v202
    %v1200 = vpop.f32.mrf.mxu0
    %v1201 = vadd.f32 0.0, %v1200
    %v1202 = vpop.f32.mrf.mxu0
    %v1203 = vpop.f32.mrf.mxu0
    %v1204 = vadd.f32 0.0, %v1203
    %v1205 = vpop.f32.mrf.mxu0
    %1206 = vmatprep.mubr.bf16.mxu0 0
    %1207 = vmatmul.mubr.bf16.gmra.mxu0 %v205
    %v1208 = vpop.f32.mrf.mxu0
    %v1209 = vadd.f32 0.0, %v1208
    %v1210 = vpop.f32.mrf.mxu0
    %v1211 = vpop.f32.mrf.mxu0
    %v1212 = vadd.f32 0.0, %v1211
    %v1213 = vpop.f32.mrf.mxu0
    %1214 = vmatprep.mubr.bf16.mxu0 0
    %1215 = vmatmul.mubr.bf16.gmra.mxu0 %v208
    %v1216 = vpop.f32.mrf.mxu0
    %v1217 = vadd.f32 0.0, %v1216
    %v1218 = vpop.f32.mrf.mxu0
    %v1219 = vpop.f32.mrf.mxu0
    %v1220 = vadd.f32 0.0, %v1219
    %v1221 = vpop.f32.mrf.mxu0
    %1222 = vdwg.mxu0
    %1223 = vst [vmem:[#allocation6] sm:$0xff] %v1161
    %1224 = vst [vmem:[#allocation6 + $0x8] sm:$0xff] %v1164
    %1225 = vst [vmem:[#allocation6 + $0x10] sm:$0xff] %v1169
    %1226 = vst [vmem:[#allocation6 + $0x18] sm:$0xff] %v1172
    %1227 = vst [vmem:[#allocation6 + $0x20] sm:$0xff] %v1177
    %1228 = vst [vmem:[#allocation6 + $0x28] sm:$0xff] %v1180
    %1229 = vst [vmem:[#allocation6 + $0x30] sm:$0xff] %v1185
    %1230 = vst [vmem:[#allocation6 + $0x38] sm:$0xff] %v1188
    %1231 = vst [vmem:[#allocation6 + $0x40] sm:$0xff] %v1193
    %1232 = vst [vmem:[#allocation6 + $0x48] sm:$0xff] %v1196
    %1233 = vst [vmem:[#allocation6 + $0x50] sm:$0xff] %v1201
    %1234 = vst [vmem:[#allocation6 + $0x58] sm:$0xff] %v1204
    %1235 = vst [vmem:[#allocation6 + $0x60] sm:$0xff] %v1209
    %1236 = vst [vmem:[#allocation6 + $0x68] sm:$0xff] %v1212
    %1237 = vst [vmem:[#allocation6 + $0x70] sm:$0xff] %v1217
    %1238 = vst [vmem:[#allocation6 + $0x78] sm:$0xff] %v1220
    // Predicated region
    $region18: #{tpu_custom_call.1} parent=1 // pred_check
      _
    $region19: #{tpu_custom_call.1} parent=1 // pred_check_branch
      %1240 = sbr.rel (0) target = $region21
    $region20: #{tpu_custom_call.1} parent=1 // pred_region
      %s1242 = ssub.s32 8192, 8192
      %1243 = vsyncadd [#allocation4], %s1242
      %s1244 = sshll.u32 [#allocation5], 4
      %s1245 = int_to_ptr.vmem [resolvable:$true] %s1244
      %1250 = dma.vmem_to_hbm [thread:$0]  %s1245, 8192, %s3, [#allocation4], 512, 512, 32
    $region21: #{tpu_custom_call.1} parent=1 // pred_fallthru
      _
    // Predicated region
    $region22: #{tpu_custom_call.1} parent=1 // pred_check
      _
    $region23: #{tpu_custom_call.1} parent=1 // pred_check_branch
      %1252 = sbr.rel (0) target = $region25
    $region24: #{tpu_custom_call.1} parent=1 // pred_region
      %s1254 = ssub.s32 2048, 2048
      %1255 = vsyncadd [#allocation7], %s1254
      %s1256 = sshll.u32 [#allocation6], 4
      %s1257 = int_to_ptr.vmem [resolvable:$true] %s1256
      %1262 = dma.vmem_to_hbm [thread:$0]  %s1257, 2048, %s4, [#allocation7], 128, 128, 8
    $region25: #{tpu_custom_call.1} parent=1 // pred_fallthru
      _
    // Predicated region
    $region26: #{tpu_custom_call.1} parent=1 // pred_check
      _
    $region27: #{tpu_custom_call.1} parent=1 // pred_check_branch
      %1264 = sbr.rel (0) target = $region29
    $region28: #{tpu_custom_call.1} parent=1 // pred_region
      %1265 = dma.done [#allocation4], 8192
    $region29: #{tpu_custom_call.1} parent=1 // pred_fallthru
      _
    // Predicated region
    $region30: #{tpu_custom_call.1} parent=1 // pred_check
      _
    $region31: #{tpu_custom_call.1} parent=1 // pred_check_branch
      %1267 = sbr.rel (0) target = $region33
    $region32: #{tpu_custom_call.1} parent=1 // pred_region
      %1268 = dma.done [#allocation7], 2048
    $region33: #{tpu_custom_call.1} parent=1 // pred_fallthru
      _
    %1269 = vsyncpa [#allocation3], 1
    %1270 = vsyncpa [#allocation4], 1
    %1271 = vsyncpa [#allocation7], 1

</llo_original>
